<compile_context>
chip_gen: v7x
topology: tpu7x:2x2x1
jax: 0.10.0
libtpu: 0.0.40
codegen_flags: <defaults>
</compile_context>

<pallas_src>
import jax
import jax.numpy as jnp
import numpy as np
from jax.experimental import pallas as pl
from jax.experimental.pallas import tpu as pltpu


# ---------------------------------------------------------------------------
# Kernel 1: hyper-network.  Grid = (batch blocks, ks^2 taps).
# ---------------------------------------------------------------------------
def _hyper_net_kernel(h_ref, wfc_ref, bfc_ref, w1_ref, b1_ref, w2_ref, b2_ref,
                      w3_ref, b3_ref, o_ref):
    def lrelu(v):                       # nn.LeakyReLU(): negative_slope = 0.01
        return jnp.where(v >= 0, v, 0.01 * v)

    k = h_ref[...].astype(jnp.float32)                                    # (bb, E)
    k = lrelu(jnp.dot(k, wfc_ref[0], preferred_element_type=jnp.float32) + bfc_ref[0])
    k = lrelu(jnp.dot(k, w1_ref[...], preferred_element_type=jnp.float32) + b1_ref[...])
    k = lrelu(jnp.dot(k, w2_ref[...], preferred_element_type=jnp.float32) + b2_ref[...])
    k = jnp.dot(k, w3_ref[...], preferred_element_type=jnp.float32) + b3_ref[...]
    o_ref[0] = k.astype(o_ref.dtype)                                      # (bb, O*Cin)


# ---------------------------------------------------------------------------
# Kernel 2: per-sample dynamic conv as a single fused im2col matmul.
# ---------------------------------------------------------------------------
def _make_conv_kernel(ks, cin, wp, bb):
    kk = ks * ks

    def kernel(w_ref, x_ref, o_ref, stack_ref):
        # w_ref:     (bb, O, kk*Cin + 1) f32  per-sample weights + bias column
        # x_ref:     (bb, Cin, L)        native dtype, zero-padded & lane-dense
        # o_ref:     (bb, O, L)
        # stack_ref: (kk*Cin + 1, L)     im2col scratch (VMEM)
        L = x_ref.shape[-1]
        # ones row: the bias rides along as one extra matmul column (no VPU add).
        stack_ref[kk * cin:kk * cin + 1, :] = jnp.ones((1, L), dtype=stack_ref.dtype)
        for i in range(bb):
            x = x_ref[i]                                   # (Cin, L), native dtype
            for ky in range(ks):
                for kx in range(ks):
                    off = ky * wp + kx
                    t = ky * ks + kx
                    # shifted[:, p] == x[:, p + off]; zero padding was applied on
                    # the host, so no boundary masks are needed for kept outputs.
                    shifted = x if off == 0 else pltpu.roll(x, L - off, axis=1)
                    stack_ref[t * cin:(t + 1) * cin, :] = shifted
            acc = jnp.dot(w_ref[i], stack_ref[...],
                          preferred_element_type=jnp.float32)   # one MXU matmul
            o_ref[i] = acc.astype(o_ref.dtype)

    return kernel


# ---------------------------------------------------------------------------
# Wrapper: HyperConv2d.forward(x, h)
# ---------------------------------------------------------------------------
def hyper_conv2d(x, h, params, *, out_channels, kernel_size, stride=1,
                 padding=0, dilation=1, groups=1, padding_mode="zeros"):
    """x: (B, Cin, H, W);  h: (B, h_elements);  returns (B, O, Ho, Wo)."""
    assert dilation == 1, "TODO(synk): dilation != 1 not implemented"
    assert groups == 1, "TODO(synk): groups != 1 not implemented"
    assert padding_mode == "zeros", "TODO(synk): only 'zeros' padding_mode implemented"

    ks = kernel_size
    kk = ks * ks
    B, cin, H, W = x.shape
    E = h.shape[1]
    O = out_channels
    f32 = jnp.float32

    mid1 = params["fc_w"].shape[0] // kk
    mid2 = params["w1"].shape[0]
    mid3 = params["w2"].shape[0]
    oc_net = params["w3"].shape[0]
    assert oc_net == O * (cin // groups)

    # ---- hyper-net weights: per-tap fc slices + original small 1x1 weights ----
    wfc = params["fc_w"].astype(f32).reshape(mid1, kk, E).transpose(1, 2, 0)   # (kk, E, 16)
    bfc = params["fc_b"].astype(f32).reshape(mid1, kk).T.reshape(kk, 1, mid1)  # (kk, 1, 16)
    w1t = params["w1"].astype(f32).T
    b1r = params["b1"].astype(f32).reshape(1, mid2)
    w2t = params["w2"].astype(f32).T
    b2r = params["b2"].astype(f32).reshape(1, mid3)
    w3t = params["w3"].astype(f32).T
    b3r = params["b3"].astype(f32).reshape(1, oc_net)

    bb1 = B if B <= 128 else 128
    if B % bb1 or (bb1 < B and bb1 % 8):
        bb1 = B
    nb1 = B // bb1

    k_taps = pl.pallas_call(
        _hyper_net_kernel,
        out_shape=jax.ShapeDtypeStruct((kk, B, oc_net), f32),
        grid_spec=pltpu.PrefetchScalarGridSpec(
            num_scalar_prefetch=0,
            grid=(nb1, kk),
            in_specs=[
                pl.BlockSpec((bb1, E), lambda i, t: (i, 0)),
                pl.BlockSpec((1, E, mid1), lambda i, t: (t, 0, 0)),
                pl.BlockSpec((1, 1, mid1), lambda i, t: (t, 0, 0)),
                pl.BlockSpec((mid1, mid2), lambda i, t: (0, 0)),
                pl.BlockSpec((1, mid2), lambda i, t: (0, 0)),
                pl.BlockSpec((mid2, mid3), lambda i, t: (0, 0)),
                pl.BlockSpec((1, mid3), lambda i, t: (0, 0)),
                pl.BlockSpec((mid3, oc_net), lambda i, t: (0, 0)),
                pl.BlockSpec((1, oc_net), lambda i, t: (0, 0)),
            ],
            out_specs=pl.BlockSpec((1, bb1, oc_net), lambda i, t: (t, i, 0)),
        ),
        compiler_params=pltpu.CompilerParams(
            dimension_semantics=("parallel", "parallel")),
    )(h, wfc, bfc, w1t, b1r, w2t, b2r, w3t, b3r)

    # (kk, B, O*Cin) -> per-sample fused-conv weights (B, O, kk*Cin), columns
    # ordered tap-major to match the im2col stacking in kernel 2, + bias column.
    # TODO(synk): emit this layout directly from kernel 1 to skip the transpose.
    w2d = k_taps.reshape(kk, B, O, cin).transpose(1, 2, 0, 3).reshape(B, O, kk * cin)
    bias = params.get("bias")
    if bias is None:
        bias = jnp.zeros((O,), f32)
    w_aug = jnp.concatenate(
        [w2d, jnp.broadcast_to(bias.astype(f32).reshape(1, O, 1), (B, O, 1))],
        axis=-1)                                                   # (B, O, kk*Cin+1)

    # ---- zero-pad spatially (handles `padding` & conv borders exactly), flatten,
    #      and lane-pad HW to a multiple of 128 so loads/stores are lane-dense ----
    Hp, Wp = H + 2 * padding, W + 2 * padding
    Ho, Wo = Hp - ks + 1, Wp - ks + 1
    assert Ho >= 1 and Wo >= 1
    hw = Hp * Wp
    L = ((hw + 127) // 128) * 128
    xpad = jnp.pad(x, ((0, 0), (0, 0), (padding, padding), (padding, padding)))
    x_flat = xpad.reshape(B, cin, hw)
    if L > hw:
        x_flat = jnp.pad(x_flat, ((0, 0), (0, 0), (0, L - hw)))

    bb2 = 4 if B >= 8 else 1            # amortize per-step overhead at larger batch
    while B % bb2:
        bb2 -= 1
    nb2 = B // bb2

    out_flat = pl.pallas_call(
        _make_conv_kernel(ks, cin, Wp, bb2),
        out_shape=jax.ShapeDtypeStruct((B, O, L), x.dtype),
        grid_spec=pltpu.PrefetchScalarGridSpec(
            num_scalar_prefetch=0,
            grid=(nb2,),
            in_specs=[
                pl.BlockSpec((bb2, O, kk * cin + 1), lambda b: (b, 0, 0)),
                pl.BlockSpec((bb2, cin, L), lambda b: (b, 0, 0)),
            ],
            out_specs=pl.BlockSpec((bb2, O, L), lambda b: (b, 0, 0)),
            scratch_shapes=[pltpu.VMEM((kk * cin + 1, L), x.dtype)],
        ),
        compiler_params=pltpu.CompilerParams(dimension_semantics=("parallel",)),
    )(w_aug, x_flat)

    # Valid region of the padded-grid output, then stride.
    out = out_flat[:, :, :hw].reshape(B, O, Hp, Wp)[:, :, :Ho, :Wo]
    if stride > 1:
        # TODO(synk): fold stride into the kernel output indexing instead of
        # computing the stride-1 result and subsampling.
        out = out[:, :, ::stride, ::stride]
    return out


# ---------------------------------------------------------------------------
# Pure-JAX reference (mirrors the PyTorch forward)
# ---------------------------------------------------------------------------
def hyper_conv2d_ref(x, h, params, *, out_channels, kernel_size, stride=1,
                     padding=0, groups=1):
    ks = kernel_size
    B, cin, _, _ = x.shape
    lrelu = lambda v: jax.nn.leaky_relu(v, 0.01)
    hp = "highest"

    k = lrelu(jnp.dot(h, params["fc_w"].T, precision=hp) + params["fc_b"])
    k = k.reshape(B, -1, ks, ks)
    k = lrelu(jnp.einsum("oi,bihw->bohw", params["w1"], k, precision=hp)
              + params["b1"][None, :, None, None])
    k = lrelu(jnp.einsum("oi,bihw->bohw", params["w2"], k, precision=hp)
              + params["b2"][None, :, None, None])
    k = (jnp.einsum("oi,bihw->bohw", params["w3"], k, precision=hp)
         + params["b3"][None, :, None, None])          # (B, O*Cin, ks, ks)

    outs = []
    for b in range(B):
        w = k[b].reshape(out_channels, cin // groups, ks, ks)
        yb = jax.lax.conv_general_dilated(
            x[b:b + 1], w, window_strides=(stride, stride),
            padding=[(padding, padding), (padding, padding)],
            dimension_numbers=("NCHW", "OIHW", "NCHW"),
            precision=jax.lax.Precision.HIGHEST)
        outs.append(yb + params["bias"].reshape(1, out_channels, 1, 1))
    return jnp.concatenate(outs, axis=0)


if __name__ == "__main__":
    # Small shapes consistent with the module.
    B, Cin, H, W = 2, 4, 16, 16
    O, KS, E = 8, 3, 6
    STRIDE, PAD = 1, 1
    mid1, mid2, mid3 = 16, 32, 32

    key = jax.random.PRNGKey(0)
    rngs = jax.random.split(key, 11)
    x = jax.random.normal(rngs[0], (B, Cin, H, W), dtype=jnp.float32)
    h = jax.random.normal(rngs[1], (B, E), dtype=jnp.float32)

    def kaiming(k, shape, fan_in):
        return jax.random.normal(k, shape, dtype=jnp.float32) * np.sqrt(2.0 / fan_in)

    bnd = 1.0 / np.sqrt(Cin * KS * KS)
    params = dict(
        fc_w=kaiming(rngs[2], (mid1 * KS * KS, E), E),
        fc_b=jax.random.uniform(rngs[3], (mid1 * KS * KS,), dtype=jnp.float32,
                                minval=-0.1, maxval=0.1),
        w1=kaiming(rngs[4], (mid2, mid1), mid1),
        b1=jax.random.uniform(rngs[5], (mid2,), dtype=jnp.float32, minval=-0.1, maxval=0.1),
        w2=kaiming(rngs[6], (mid3, mid2), mid2),
        b2=jax.random.uniform(rngs[7], (mid3,), dtype=jnp.float32, minval=-0.1, maxval=0.1),
        w3=jax.random.normal(rngs[8], (O * Cin, mid3), dtype=jnp.float32)
           * np.sqrt(2.0 / (mid3 + O * Cin)),
        b3=jax.random.uniform(rngs[9], (O * Cin,), dtype=jnp.float32, minval=-0.1, maxval=0.1),
        bias=jax.random.uniform(rngs[10], (O,), dtype=jnp.float32, minval=-bnd, maxval=bnd),
    )

    out = hyper_conv2d(x, h, params, out_channels=O, kernel_size=KS,
                       stride=STRIDE, padding=PAD)
    out = jax.block_until_ready(out)

    ref = jax.block_until_ready(
        hyper_conv2d_ref(x, h, params, out_channels=O, kernel_size=KS,
                         stride=STRIDE, padding=PAD))

    # Loose tolerance: default-precision MXU matmuls may use bf16 passes.
    np.testing.assert_allclose(np.asarray(out), np.asarray(ref), rtol=2e-2, atol=2e-2)

    print("KERNEL_OK")
</pallas_src>

<mosaic_0001>
module attributes {stable_mosaic.version = 11 : i64} {
  func.func @_hyper_net_kernel(%arg0: i32, %arg1: i32, %arg2: memref<2x6xf32, #tpu.memory_space<vmem>>, %arg3: memref<1x6x16xf32, #tpu.memory_space<vmem>>, %arg4: memref<1x1x16xf32, #tpu.memory_space<vmem>>, %arg5: memref<16x32xf32, #tpu.memory_space<vmem>>, %arg6: memref<1x32xf32, #tpu.memory_space<vmem>>, %arg7: memref<32x32xf32, #tpu.memory_space<vmem>>, %arg8: memref<1x32xf32, #tpu.memory_space<vmem>>, %arg9: memref<32x32xf32, #tpu.memory_space<vmem>>, %arg10: memref<1x32xf32, #tpu.memory_space<vmem>>, %arg11: memref<1x2x32xf32, #tpu.memory_space<vmem>>) attributes {dimension_semantics = [#tpu.dimension_semantics<parallel>, #tpu.dimension_semantics<parallel>], iteration_bounds = array<i64: 1, 9>, scalar_prefetch = 0 : i64, scratch_operands = 0 : i64, tpu.core_type = #tpu.core_type<tc>, window_params = [{transform_indices = @transform_0, window_bounds = array<i64: 2, 6>}, {transform_indices = @transform_1, window_bounds = array<i64: 1, 6, 16>}, {transform_indices = @transform_2, window_bounds = array<i64: 1, 1, 16>}, {pipeline_mode = #tpu.pipeline_mode<synchronous>, transform_indices = @transform_3, window_bounds = array<i64: 16, 32>}, {pipeline_mode = #tpu.pipeline_mode<synchronous>, transform_indices = @transform_4, window_bounds = array<i64: 1, 32>}, {pipeline_mode = #tpu.pipeline_mode<synchronous>, transform_indices = @transform_5, window_bounds = array<i64: 32, 32>}, {pipeline_mode = #tpu.pipeline_mode<synchronous>, transform_indices = @transform_6, window_bounds = array<i64: 1, 32>}, {pipeline_mode = #tpu.pipeline_mode<synchronous>, transform_indices = @transform_7, window_bounds = array<i64: 32, 32>}, {pipeline_mode = #tpu.pipeline_mode<synchronous>, transform_indices = @transform_8, window_bounds = array<i64: 1, 32>}, {transform_indices = @transform_9, window_bounds = array<i64: 1, 2, 32>}]} {
    %c0 = arith.constant 0 : index
    %c0_0 = arith.constant 0 : index
    %0 = vector.load %arg2[%c0, %c0_0] : memref<2x6xf32, #tpu.memory_space<vmem>>, vector<2x6xf32>
    %c0_1 = arith.constant 0 : index
    %c0_2 = arith.constant 0 : index
    %c0_3 = arith.constant 0 : index
    %1 = vector.load %arg3[%c0_1, %c0_2, %c0_3] : memref<1x6x16xf32, #tpu.memory_space<vmem>>, vector<1x6x16xf32>
    %2 = vector.shape_cast %1 : vector<1x6x16xf32> to vector<6x16xf32>
    %cst = arith.constant dense<0.000000e+00> : vector<2x16xf32>
    %3 = tpu.matmul %0, %2, %cst {dimension_numbers = #tpu.dot_dimension_numbers<[1], [0], [0], [1], [0, 0, 1, 1], [], []>} : vector<2x6xf32>, vector<6x16xf32>, vector<2x16xf32> -> vector<2x16xf32>
    %c0_4 = arith.constant 0 : index
    %c0_5 = arith.constant 0 : index
    %c0_6 = arith.constant 0 : index
    %4 = vector.load %arg4[%c0_4, %c0_5, %c0_6] : memref<1x1x16xf32, #tpu.memory_space<vmem>>, vector<1x1x16xf32>
    %5 = vector.shape_cast %4 : vector<1x1x16xf32> to vector<1x16xf32>
    %6 = vector.broadcast %5 : vector<1x16xf32> to vector<2x16xf32>
    %7 = arith.addf %3, %6 : vector<2x16xf32>
    %cst_7 = arith.constant 0.000000e+00 : f32
    %8 = vector.broadcast %cst_7 : f32 to vector<2x16xf32>
    %9 = arith.cmpf oge, %7, %8 : vector<2x16xf32>
    %cst_8 = arith.constant 0.00999999977 : f32
    %10 = vector.broadcast %cst_8 : f32 to vector<2x16xf32>
    %11 = arith.mulf %10, %7 : vector<2x16xf32>
    %12 = arith.select %9, %7, %11 : vector<2x16xi1>, vector<2x16xf32>
    %c0_9 = arith.constant 0 : index
    %c0_10 = arith.constant 0 : index
    %13 = vector.load %arg5[%c0_9, %c0_10] : memref<16x32xf32, #tpu.memory_space<vmem>>, vector<16x32xf32>
    %cst_11 = arith.constant dense<0.000000e+00> : vector<2x32xf32>
    %14 = tpu.matmul %12, %13, %cst_11 {dimension_numbers = #tpu.dot_dimension_numbers<[1], [0], [0], [1], [0, 0, 1, 1], [], []>} : vector<2x16xf32>, vector<16x32xf32>, vector<2x32xf32> -> vector<2x32xf32>
    %c0_12 = arith.constant 0 : index
    %c0_13 = arith.constant 0 : index
    %15 = vector.load %arg6[%c0_12, %c0_13] : memref<1x32xf32, #tpu.memory_space<vmem>>, vector<1x32xf32>
    %16 = vector.broadcast %15 : vector<1x32xf32> to vector<2x32xf32>
    %17 = arith.addf %14, %16 : vector<2x32xf32>
    %cst_14 = arith.constant 0.000000e+00 : f32
    %18 = vector.broadcast %cst_14 : f32 to vector<2x32xf32>
    %19 = arith.cmpf oge, %17, %18 : vector<2x32xf32>
    %cst_15 = arith.constant 0.00999999977 : f32
    %20 = vector.broadcast %cst_15 : f32 to vector<2x32xf32>
    %21 = arith.mulf %20, %17 : vector<2x32xf32>
    %22 = arith.select %19, %17, %21 : vector<2x32xi1>, vector<2x32xf32>
    %c0_16 = arith.constant 0 : index
    %c0_17 = arith.constant 0 : index
    %23 = vector.load %arg7[%c0_16, %c0_17] : memref<32x32xf32, #tpu.memory_space<vmem>>, vector<32x32xf32>
    %cst_18 = arith.constant dense<0.000000e+00> : vector<2x32xf32>
    %24 = tpu.matmul %22, %23, %cst_18 {dimension_numbers = #tpu.dot_dimension_numbers<[1], [0], [0], [1], [0, 0, 1, 1], [], []>} : vector<2x32xf32>, vector<32x32xf32>, vector<2x32xf32> -> vector<2x32xf32>
    %c0_19 = arith.constant 0 : index
    %c0_20 = arith.constant 0 : index
    %25 = vector.load %arg8[%c0_19, %c0_20] : memref<1x32xf32, #tpu.memory_space<vmem>>, vector<1x32xf32>
    %26 = vector.broadcast %25 : vector<1x32xf32> to vector<2x32xf32>
    %27 = arith.addf %24, %26 : vector<2x32xf32>
    %cst_21 = arith.constant 0.000000e+00 : f32
    %28 = vector.broadcast %cst_21 : f32 to vector<2x32xf32>
    %29 = arith.cmpf oge, %27, %28 : vector<2x32xf32>
    %cst_22 = arith.constant 0.00999999977 : f32
    %30 = vector.broadcast %cst_22 : f32 to vector<2x32xf32>
    %31 = arith.mulf %30, %27 : vector<2x32xf32>
    %32 = arith.select %29, %27, %31 : vector<2x32xi1>, vector<2x32xf32>
    %c0_23 = arith.constant 0 : index
    %c0_24 = arith.constant 0 : index
    %33 = vector.load %arg9[%c0_23, %c0_24] : memref<32x32xf32, #tpu.memory_space<vmem>>, vector<32x32xf32>
    %cst_25 = arith.constant dense<0.000000e+00> : vector<2x32xf32>
    %34 = tpu.matmul %32, %33, %cst_25 {dimension_numbers = #tpu.dot_dimension_numbers<[1], [0], [0], [1], [0, 0, 1, 1], [], []>} : vector<2x32xf32>, vector<32x32xf32>, vector<2x32xf32> -> vector<2x32xf32>
    %c0_26 = arith.constant 0 : index
    %c0_27 = arith.constant 0 : index
    %35 = vector.load %arg10[%c0_26, %c0_27] : memref<1x32xf32, #tpu.memory_space<vmem>>, vector<1x32xf32>
    %36 = vector.broadcast %35 : vector<1x32xf32> to vector<2x32xf32>
    %37 = arith.addf %34, %36 : vector<2x32xf32>
    %c0_28 = arith.constant 0 : index
    %c0_29 = arith.constant 0 : index
    %c0_30 = arith.constant 0 : index
    %38 = vector.load %arg11[%c0_28, %c0_29, %c0_30] : memref<1x2x32xf32, #tpu.memory_space<vmem>>, vector<1x2x32xf32>
    %39 = vector.shape_cast %38 : vector<1x2x32xf32> to vector<2x32xf32>
    %40 = vector.shape_cast %37 : vector<2x32xf32> to vector<1x2x32xf32>
    tpu.vector_store %arg11[%c0_28, %c0_29, %c0_30], %40 {strides = array<i32>} : memref<1x2x32xf32, #tpu.memory_space<vmem>>, vector<1x2x32xf32>,
    return
  }
  func.func @transform_0(%arg0: i32, %arg1: i32) -> (i32, i32) {
    %c0_i32 = arith.constant 0 : i32
    %c0_i32_0 = arith.constant 0 : i32
    return %arg0, %c0_i32 : i32, i32
  }
  func.func @transform_1(%arg0: i32, %arg1: i32) -> (i32, i32, i32) {
    %c0_i32 = arith.constant 0 : i32
    %c0_i32_0 = arith.constant 0 : i32
    %c0_i32_1 = arith.constant 0 : i32
    return %arg1, %c0_i32, %c0_i32_0 : i32, i32, i32
  }
  func.func @transform_2(%arg0: i32, %arg1: i32) -> (i32, i32, i32) {
    %c0_i32 = arith.constant 0 : i32
    %c0_i32_0 = arith.constant 0 : i32
    %c0_i32_1 = arith.constant 0 : i32
    return %arg1, %c0_i32, %c0_i32_0 : i32, i32, i32
  }
  func.func @transform_3(%arg0: i32, %arg1: i32) -> (i32, i32) {
    %c0_i32 = arith.constant 0 : i32
    %c0_i32_0 = arith.constant 0 : i32
    %c0_i32_1 = arith.constant 0 : i32
    return %c0_i32, %c0_i32_0 : i32, i32
  }
  func.func @transform_4(%arg0: i32, %arg1: i32) -> (i32, i32) {
    %c0_i32 = arith.constant 0 : i32
    %c0_i32_0 = arith.constant 0 : i32
    %c0_i32_1 = arith.constant 0 : i32
    return %c0_i32, %c0_i32_0 : i32, i32
  }
  func.func @transform_5(%arg0: i32, %arg1: i32) -> (i32, i32) {
    %c0_i32 = arith.constant 0 : i32
    %c0_i32_0 = arith.constant 0 : i32
    %c0_i32_1 = arith.constant 0 : i32
    return %c0_i32, %c0_i32_0 : i32, i32
  }
  func.func @transform_6(%arg0: i32, %arg1: i32) -> (i32, i32) {
    %c0_i32 = arith.constant 0 : i32
    %c0_i32_0 = arith.constant 0 : i32
    %c0_i32_1 = arith.constant 0 : i32
    return %c0_i32, %c0_i32_0 : i32, i32
  }
  func.func @transform_7(%arg0: i32, %arg1: i32) -> (i32, i32) {
    %c0_i32 = arith.constant 0 : i32
    %c0_i32_0 = arith.constant 0 : i32
    %c0_i32_1 = arith.constant 0 : i32
    return %c0_i32, %c0_i32_0 : i32, i32
  }
  func.func @transform_8(%arg0: i32, %arg1: i32) -> (i32, i32) {
    %c0_i32 = arith.constant 0 : i32
    %c0_i32_0 = arith.constant 0 : i32
    %c0_i32_1 = arith.constant 0 : i32
    return %c0_i32, %c0_i32_0 : i32, i32
  }
  func.func @transform_9(%arg0: i32, %arg1: i32) -> (i32, i32, i32) {
    %c0_i32 = arith.constant 0 : i32
    %c0_i32_0 = arith.constant 0 : i32
    return %arg1, %arg0, %c0_i32 : i32, i32, i32
  }
}

</mosaic_0001>

<llo_original>
// kernel: tpu_custom_call.1
$region0: #{tpu_custom_call.1}
  #allocation0 [shape = 'u32[]', space=smem, size = 0x4, offset = 0x4, fixed_abs, tag = 'smem constant byte address 0x4 - core index']
  #allocation1 [shape = 'u32[144,128]{1,0:T(1,128)}', space=vmem, size = 0x12000, scoped, tag = 'internal scratch']
  %s0 = inlined_call_operand.hbm [shape: f32[2,6], index: 0, kind: input, shape index: {}]
  %s1 = inlined_call_operand.hbm [shape: f32[9,6,16], index: 1, kind: input, shape index: {}]
  %s2 = inlined_call_operand.hbm [shape: f32[9,1,16], index: 2, kind: input, shape index: {}]
  %s3 = inlined_call_operand.hbm [shape: f32[16,32], index: 3, kind: input, shape index: {}]
  %s4 = inlined_call_operand.vmem [shape: f32[1,32], index: 4, kind: input, shape index: {}]
  %s5 = inlined_call_operand.hbm [shape: f32[32,32], index: 5, kind: input, shape index: {}]
  %s6 = inlined_call_operand.vmem [shape: f32[1,32], index: 6, kind: input, shape index: {}]
  %s7 = inlined_call_operand.hbm [shape: f32[32,32], index: 7, kind: input, shape index: {}]
  %s8 = inlined_call_operand.vmem [shape: f32[1,32], index: 8, kind: input, shape index: {}]
  %s9 = inlined_call_operand.hbm [shape: f32[9,2,32], index: 9, kind: output, shape index: {}]
  %s10 = sld [smem:[#allocation0]]
  $region93: #{tpu_custom_call.1} parent=0
    _
  %s12 = ssub.s32 1, %s10
  %s13 = scalar_select 0, %s12, %s10
  $region1: #{tpu_custom_call.1} parent=0
    #allocation2 [shape = 'u8[1024]{0}', space=vmem, size = 0x400, scoped, tag = 'input window, operand 0, single buffered']
    #allocation3 [shape = 's32[2]{0}', space=sflag, size = 0x8, scoped, tag = 'scoped memory for tpu_custom_call.1']
    #allocation4 [shape = 's32[2]{0}', space=sflag, size = 0x8, scoped, tag = 'scoped memory for tpu_custom_call.1']
    #allocation5 [shape = 'u8[8192]{0}', space=vmem, size = 0x2000, scoped, tag = 'input window, operand 1']
    #allocation6 [shape = 's32[2]{0}', space=sflag, size = 0x8, scoped, tag = 'scoped memory for tpu_custom_call.1']
    #allocation7 [shape = 'u8[1024]{0}', space=vmem, size = 0x400, scoped, tag = 'input window, operand 2']
    #allocation8 [shape = 'u8[8192]{0}', space=vmem, size = 0x2000, scoped, tag = 'input window, operand 3, single buffered']
    #allocation9 [shape = 's32[1]{0}', space=sflag, size = 0x4, scoped, tag = 'scoped memory for tpu_custom_call.1']
    #allocation10 [shape = 'u8[16384]{0}', space=vmem, size = 0x4000, scoped, tag = 'input window, operand 5, single buffered']
    #allocation11 [shape = 'u8[16384]{0}', space=vmem, size = 0x4000, scoped, tag = 'input window, operand 7, single buffered']
    #allocation12 [shape = 's32[1]{0}', space=sflag, size = 0x4, scoped, tag = 'scoped memory for tpu_custom_call.1']
    #allocation13 [shape = 'u8[2048]{0}', space=vmem, size = 0x800, scoped, tag = 'output window, operand 0']
    %14 = vsyncpa [#allocation3], 0
    %15 = vsyncpa [#allocation6], 0
    %s16 = scalar_lea.sflag [#allocation6], 1
    %17 = vsyncpa %s16, 0
    %18 = vsyncpa [#allocation9], 0
    %19 = vsyncpa [#allocation12], 0
    %20 = vsyncpa [#allocation4], 0
    %s21 = scalar_lea.sflag [#allocation4], 1
    %22 = vsyncpa %s21, 0
    loop: start=0, step=1, limit=11
    $region2: #{tpu_custom_call.1} parent=1 // loop_pre_header
      _
    $region3: #{tpu_custom_call.1} parent=1 // loop_header
      %s24 = sphi 0, %s28
      %p25 = scmp.ge.s32.totalorder %s24, 11
      %s31 = sphi 0, %s43
      %s32 = sphi 0, %s39
      %s33 = sphi 0, %s31
      %s34 = sphi 0, %s32
      %s35 = sphi 0, %s33
      %s36 = sphi 0, %s34
      %s46 = sphi 0, %s48
      %s49 = sphi 0, %s46
      %s50 = sphi 0, %s49
      %s66 = sphi 0, %s50
      %s72 = sphi 0, %s74
      %s75 = sphi 0, %s72
      %s76 = sphi 0, %s75
      %s92 = sphi 0, %s76
      %s98 = sphi 0, %s100
      %s101 = sphi 0, %s98
      %s102 = sphi 0, %s101
      %s118 = sphi 0, %s102
      %s122 = sphi 0, %s122
      %s124 = sphi 0, %s122
      %s125 = sphi 0, %s124
      %s139 = sphi 0, %s125
      %s143 = sphi 0, %s143
      %s145 = sphi 0, %s143
      %s146 = sphi 0, %s145
      %s160 = sphi 0, %s146
      %s164 = sphi 0, %s164
      %s166 = sphi 0, %s164
      %s167 = sphi 0, %s166
      %s181 = sphi 0, %s167
      %s185 = sphi 0, %s185
      %s187 = sphi 0, %s185
      %s188 = sphi 0, %s187
      %s202 = sphi 0, %s188
      %s206 = sphi 0, %s206
      %s208 = sphi 0, %s206
      %s209 = sphi 0, %s208
      %s223 = sphi 0, %s209
      %s227 = sphi 0, %s227
      %s229 = sphi 0, %s227
      %s230 = sphi 0, %s229
      %s244 = sphi 0, %s230
      %s252 = sphi 0, %s254
      %s255 = sphi 0, %s252
      %s256 = sphi 0, %s255
      %s272 = sphi 0, %s256
    $region4: #{tpu_custom_call.1} parent=1 // loop_header_branch
      %27 = sbr.rel (%p25) target = $region8
    $region5: #{tpu_custom_call.1} parent=1 // loop_body
      %s29 = ssub.s32 %s24, 1
      %s30 = ssub.s32 %s24, 2
      %s37 = sadd.s32 1, %s32
      %p38 = scmp.ge.s32.totalorder %s37, 9
      %s39 = scalar_select %p38, 0, %s37
      %s40 = sadd.s32 1, %s31
      %s41 = scalar_select %p38, %s40, %s31
      %p42 = scmp.ge.s32.totalorder %s41, 1
      %s43 = scalar_select %p42, 0, %s41
      %s44 = ssub.s32 %s31, %s43
      %p45 = scmp.eq.s32.totalorder %s44, 0
      %s47 = sadd.s32 %s46, 1
      %s48 = scalar_select %p45, %s46, %s47
      %p51 = pneg %p45
      %p52 = scmp.eq.s32.totalorder %s24, 8
      %p53 = por %p51, %p52
      %p54 = scmp.ne.s32.totalorder %s46, %s49
      %p55 = scmp.eq.s32.totalorder %s24, 0
      %p56 = por %p54, %p55
      %p57 = scmp.ne.s32.totalorder %s46, %s49
      %p58 = scmp.eq.s32.totalorder %s29, 8
      %p59 = por %p57, %p58
      %p60 = scmp.ne.s32.totalorder %s49, %s50
      %p61 = scmp.eq.s32.totalorder %s29, 0
      %p62 = por %p60, %p61
      %p63 = scmp.ne.s32.totalorder %s49, %s50
      %p64 = scmp.eq.s32.totalorder %s30, 8
      %p65 = por %p63, %p64
      %p67 = scmp.ne.s32.totalorder %s50, %s66
      %p68 = scmp.eq.s32.totalorder %s30, 0
      %p69 = por %p67, %p68
      %s70 = ssub.s32 %s32, %s39
      %p71 = scmp.eq.s32.totalorder %s70, 0
      %s73 = sadd.s32 %s72, 1
      %s74 = scalar_select %p71, %s72, %s73
      %p77 = pneg %p71
      %p78 = scmp.eq.s32.totalorder %s24, 8
      %p79 = por %p77, %p78
      %p80 = scmp.ne.s32.totalorder %s72, %s75
      %p81 = scmp.eq.s32.totalorder %s24, 0
      %p82 = por %p80, %p81
      %p83 = scmp.ne.s32.totalorder %s72, %s75
      %p84 = scmp.eq.s32.totalorder %s29, 8
      %p85 = por %p83, %p84
      %p86 = scmp.ne.s32.totalorder %s75, %s76
      %p87 = scmp.eq.s32.totalorder %s29, 0
      %p88 = por %p86, %p87
      %p89 = scmp.ne.s32.totalorder %s75, %s76
      %p90 = scmp.eq.s32.totalorder %s30, 8
      %p91 = por %p89, %p90
      %p93 = scmp.ne.s32.totalorder %s76, %s92
      %p94 = scmp.eq.s32.totalorder %s30, 0
      %p95 = por %p93, %p94
      %s96 = ssub.s32 %s32, %s39
      %p97 = scmp.eq.s32.totalorder %s96, 0
      %s99 = sadd.s32 %s98, 1
      %s100 = scalar_select %p97, %s98, %s99
      %p103 = pneg %p97
      %p104 = scmp.eq.s32.totalorder %s24, 8
      %p105 = por %p103, %p104
      %p106 = scmp.ne.s32.totalorder %s98, %s101
      %p107 = scmp.eq.s32.totalorder %s24, 0
      %p108 = por %p106, %p107
      %p109 = scmp.ne.s32.totalorder %s98, %s101
      %p110 = scmp.eq.s32.totalorder %s29, 8
      %p111 = por %p109, %p110
      %p112 = scmp.ne.s32.totalorder %s101, %s102
      %p113 = scmp.eq.s32.totalorder %s29, 0
      %p114 = por %p112, %p113
      %p115 = scmp.ne.s32.totalorder %s101, %s102
      %p116 = scmp.eq.s32.totalorder %s30, 8
      %p117 = por %p115, %p116
      %p119 = scmp.ne.s32.totalorder %s102, %s118
      %p120 = scmp.eq.s32.totalorder %s30, 0
      %p121 = por %p119, %p120
      %s123 = sadd.s32 %s122, 1
      %p126 = scmp.eq.s32.totalorder %s24, 8
      %p127 = scmp.ne.s32.totalorder %s122, %s124
      %p128 = scmp.eq.s32.totalorder %s24, 0
      %p129 = por %p127, %p128
      %p130 = scmp.ne.s32.totalorder %s122, %s124
      %p131 = scmp.eq.s32.totalorder %s29, 8
      %p132 = por %p130, %p131
      %p133 = scmp.ne.s32.totalorder %s124, %s125
      %p134 = scmp.eq.s32.totalorder %s29, 0
      %p135 = por %p133, %p134
      %p136 = scmp.ne.s32.totalorder %s124, %s125
      %p137 = scmp.eq.s32.totalorder %s30, 8
      %p138 = por %p136, %p137
      %p140 = scmp.ne.s32.totalorder %s125, %s139
      %p141 = scmp.eq.s32.totalorder %s30, 0
      %p142 = por %p140, %p141
      %s144 = sadd.s32 %s143, 1
      %p147 = scmp.eq.s32.totalorder %s24, 8
      %p148 = scmp.ne.s32.totalorder %s143, %s145
      %p149 = scmp.eq.s32.totalorder %s24, 0
      %p150 = por %p148, %p149
      %p151 = scmp.ne.s32.totalorder %s143, %s145
      %p152 = scmp.eq.s32.totalorder %s29, 8
      %p153 = por %p151, %p152
      %p154 = scmp.ne.s32.totalorder %s145, %s146
      %p155 = scmp.eq.s32.totalorder %s29, 0
      %p156 = por %p154, %p155
      %p157 = scmp.ne.s32.totalorder %s145, %s146
      %p158 = scmp.eq.s32.totalorder %s30, 8
      %p159 = por %p157, %p158
      %p161 = scmp.ne.s32.totalorder %s146, %s160
      %p162 = scmp.eq.s32.totalorder %s30, 0
      %p163 = por %p161, %p162
      %s165 = sadd.s32 %s164, 1
      %p168 = scmp.eq.s32.totalorder %s24, 8
      %p169 = scmp.ne.s32.totalorder %s164, %s166
      %p170 = scmp.eq.s32.totalorder %s24, 0
      %p171 = por %p169, %p170
      %p172 = scmp.ne.s32.totalorder %s164, %s166
      %p173 = scmp.eq.s32.totalorder %s29, 8
      %p174 = por %p172, %p173
      %p175 = scmp.ne.s32.totalorder %s166, %s167
      %p176 = scmp.eq.s32.totalorder %s29, 0
      %p177 = por %p175, %p176
      %p178 = scmp.ne.s32.totalorder %s166, %s167
      %p179 = scmp.eq.s32.totalorder %s30, 8
      %p180 = por %p178, %p179
      %p182 = scmp.ne.s32.totalorder %s167, %s181
      %p183 = scmp.eq.s32.totalorder %s30, 0
      %p184 = por %p182, %p183
      %s186 = sadd.s32 %s185, 1
      %p189 = scmp.eq.s32.totalorder %s24, 8
      %p190 = scmp.ne.s32.totalorder %s185, %s187
      %p191 = scmp.eq.s32.totalorder %s24, 0
      %p192 = por %p190, %p191
      %p193 = scmp.ne.s32.totalorder %s185, %s187
      %p194 = scmp.eq.s32.totalorder %s29, 8
      %p195 = por %p193, %p194
      %p196 = scmp.ne.s32.totalorder %s187, %s188
      %p197 = scmp.eq.s32.totalorder %s29, 0
      %p198 = por %p196, %p197
      %p199 = scmp.ne.s32.totalorder %s187, %s188
      %p200 = scmp.eq.s32.totalorder %s30, 8
      %p201 = por %p199, %p200
      %p203 = scmp.ne.s32.totalorder %s188, %s202
      %p204 = scmp.eq.s32.totalorder %s30, 0
      %p205 = por %p203, %p204
      %s207 = sadd.s32 %s206, 1
      %p210 = scmp.eq.s32.totalorder %s24, 8
      %p211 = scmp.ne.s32.totalorder %s206, %s208
      %p212 = scmp.eq.s32.totalorder %s24, 0
      %p213 = por %p211, %p212
      %p214 = scmp.ne.s32.totalorder %s206, %s208
      %p215 = scmp.eq.s32.totalorder %s29, 8
      %p216 = por %p214, %p215
      %p217 = scmp.ne.s32.totalorder %s208, %s209
      %p218 = scmp.eq.s32.totalorder %s29, 0
      %p219 = por %p217, %p218
      %p220 = scmp.ne.s32.totalorder %s208, %s209
      %p221 = scmp.eq.s32.totalorder %s30, 8
      %p222 = por %p220, %p221
      %p224 = scmp.ne.s32.totalorder %s209, %s223
      %p225 = scmp.eq.s32.totalorder %s30, 0
      %p226 = por %p224, %p225
      %s228 = sadd.s32 %s227, 1
      %p231 = scmp.eq.s32.totalorder %s24, 8
      %p232 = scmp.ne.s32.totalorder %s227, %s229
      %p233 = scmp.eq.s32.totalorder %s24, 0
      %p234 = por %p232, %p233
      %p235 = scmp.ne.s32.totalorder %s227, %s229
      %p236 = scmp.eq.s32.totalorder %s29, 8
      %p237 = por %p235, %p236
      %p238 = scmp.ne.s32.totalorder %s229, %s230
      %p239 = scmp.eq.s32.totalorder %s29, 0
      %p240 = por %p238, %p239
      %p241 = scmp.ne.s32.totalorder %s229, %s230
      %p242 = scmp.eq.s32.totalorder %s30, 8
      %p243 = por %p241, %p242
      %p245 = scmp.ne.s32.totalorder %s230, %s244
      %p246 = scmp.eq.s32.totalorder %s30, 0
      %p247 = por %p245, %p246
      %s248 = ssub.s32 %s32, %s39
      %s249 = ssub.s32 %s31, %s43
      %s250 = sor.u32 %s248, %s249
      %p251 = scmp.eq.s32.totalorder %s250, 0
      %s253 = sadd.s32 %s252, 1
      %s254 = scalar_select %p251, %s252, %s253
      %p257 = pneg %p251
      %p258 = scmp.eq.s32.totalorder %s24, 8
      %p259 = por %p257, %p258
      %p260 = scmp.ne.s32.totalorder %s252, %s255
      %p261 = scmp.eq.s32.totalorder %s24, 0
      %p262 = por %p260, %p261
      %p263 = scmp.ne.s32.totalorder %s252, %s255
      %p264 = scmp.eq.s32.totalorder %s29, 8
      %p265 = por %p263, %p264
      %p266 = scmp.ne.s32.totalorder %s255, %s256
      %p267 = scmp.eq.s32.totalorder %s29, 0
      %p268 = por %p266, %p267
      %p269 = scmp.ne.s32.totalorder %s255, %s256
      %p270 = scmp.eq.s32.totalorder %s30, 8
      %p271 = por %p269, %p270
      %p273 = scmp.ne.s32.totalorder %s256, %s272
      %p274 = scmp.eq.s32.totalorder %s30, 0
      %p275 = por %p273, %p274
      %p276 = scmp.le.s32.totalorder 1, %s24
      %p277 = scmp.lt.s32.totalorder %s24, 10
      %p278 = pnand %p276, %p277
      %p279 = pneg %p278
      // Predicated region
      $region9: #{tpu_custom_call.1} parent=5 // pred_check
        _
      $region10: #{tpu_custom_call.1} parent=5 // pred_check_branch
        %281 = sbr.rel (%p278) target = $region12
      $region11: #{tpu_custom_call.1} parent=5 // pred_region
        %s282 = ssub.s32 %s24, 1
        // Predicated region
        $region13: #{tpu_custom_call.1} parent=11 // pred_check
          %p283 = pneg %p62
        $region14: #{tpu_custom_call.1} parent=11 // pred_check_branch
          %285 = sbr.rel (%p283) target = $region16
        $region15: #{tpu_custom_call.1} parent=11 // pred_region
          %s287 = ssub.s32 32, 32
          %288 = vsyncadd [#allocation3], %s287
          %s289 = smul.addr %s33, 32
          %s290 = scalar_lea.hbm %s0, %s289
          %s292 = sshll.u32 [#allocation2], 4
          %s293 = int_to_ptr.vmem [resolvable:$true] %s292
          %295 = dma.hbm_to_vmem [thread:$0]  %s290, 32, %s293, [#allocation3]
        $region16: #{tpu_custom_call.1} parent=11 // pred_fallthru
          _
        // Predicated region
        $region17: #{tpu_custom_call.1} parent=11 // pred_check
          %p296 = pneg %p135
        $region18: #{tpu_custom_call.1} parent=11 // pred_check_branch
          %298 = sbr.rel (%p296) target = $region20
        $region19: #{tpu_custom_call.1} parent=11 // pred_region
          %s300 = ssub.s32 256, 256
          %301 = vsyncadd [#allocation9], %s300
          %s302 = sshll.u32 [#allocation8], 4
          %s303 = int_to_ptr.vmem [resolvable:$true] %s302
          %308 = dma.hbm_to_vmem [thread:$0]  %s3, 256, %s303, [#allocation9], 128, 128, 8
        $region20: #{tpu_custom_call.1} parent=11 // pred_fallthru
          _
        // Predicated region
        $region21: #{tpu_custom_call.1} parent=11 // pred_check
          %p309 = pneg %p156
        $region22: #{tpu_custom_call.1} parent=11 // pred_check_branch
          %311 = sbr.rel (%p309) target = $region24
        $region23: #{tpu_custom_call.1} parent=11 // pred_region
          _
        $region24: #{tpu_custom_call.1} parent=11 // pred_fallthru
          _
        // Predicated region
        $region25: #{tpu_custom_call.1} parent=11 // pred_check
          %p312 = pneg %p177
        $region26: #{tpu_custom_call.1} parent=11 // pred_check_branch
          %314 = sbr.rel (%p312) target = $region28
        $region27: #{tpu_custom_call.1} parent=11 // pred_region
          %s316 = ssub.s32 512, 512
          %317 = vsyncadd [#allocation9], %s316
          %s318 = sshll.u32 [#allocation10], 4
          %s319 = int_to_ptr.vmem [resolvable:$true] %s318
          %324 = dma.hbm_to_vmem [thread:$0]  %s5, 512, %s319, [#allocation9], 128, 128, 8
        $region28: #{tpu_custom_call.1} parent=11 // pred_fallthru
          _
        // Predicated region
        $region29: #{tpu_custom_call.1} parent=11 // pred_check
          %p325 = pneg %p198
        $region30: #{tpu_custom_call.1} parent=11 // pred_check_branch
          %327 = sbr.rel (%p325) target = $region32
        $region31: #{tpu_custom_call.1} parent=11 // pred_region
          _
        $region32: #{tpu_custom_call.1} parent=11 // pred_fallthru
          _
        // Predicated region
        $region33: #{tpu_custom_call.1} parent=11 // pred_check
          %p328 = pneg %p219
        $region34: #{tpu_custom_call.1} parent=11 // pred_check_branch
          %330 = sbr.rel (%p328) target = $region36
        $region35: #{tpu_custom_call.1} parent=11 // pred_region
          %s332 = ssub.s32 512, 512
          %333 = vsyncadd [#allocation12], %s332
          %s334 = sshll.u32 [#allocation11], 4
          %s335 = int_to_ptr.vmem [resolvable:$true] %s334
          %340 = dma.hbm_to_vmem [thread:$0]  %s7, 512, %s335, [#allocation12], 128, 128, 8
        $region36: #{tpu_custom_call.1} parent=11 // pred_fallthru
          _
        // Predicated region
        $region37: #{tpu_custom_call.1} parent=11 // pred_check
          %p341 = pneg %p240
        $region38: #{tpu_custom_call.1} parent=11 // pred_check_branch
          %343 = sbr.rel (%p341) target = $region40
        $region39: #{tpu_custom_call.1} parent=11 // pred_region
          _
        $region40: #{tpu_custom_call.1} parent=11 // pred_fallthru
          _
      $region12: #{tpu_custom_call.1} parent=5 // pred_fallthru
        _
      %p344 = scmp.lt.s32.totalorder %s24, 9
      // Predicated region
      $region41: #{tpu_custom_call.1} parent=5 // pred_check
        %p345 = pneg %p344
      $region42: #{tpu_custom_call.1} parent=5 // pred_check_branch
        %347 = sbr.rel (%p345) target = $region44
      $region43: #{tpu_custom_call.1} parent=5 // pred_region
        // Predicated region
        $region45: #{tpu_custom_call.1} parent=43 // pred_check
          %p348 = pneg %p82
        $region46: #{tpu_custom_call.1} parent=43 // pred_check_branch
          %350 = sbr.rel (%p348) target = $region48
        $region47: #{tpu_custom_call.1} parent=43 // pred_region
          %s351 = sand.u32 %s24, 1
          %s352 = scalar_lea.sflag [#allocation6], %s351
          %s353 = sand.u32 %s72, 1
          %s354 = smul.addr %s353, 8
          %s355 = scalar_lea.vmem [#allocation5], %s354
          %s357 = ssub.s32 128, 128
          %358 = vsyncadd %s352, %s357
          %s359 = smul.addr %s32, 128
          %s360 = scalar_lea.hbm %s1, %s359
          %s362 = sshll.u32 %s355, 4
          %s363 = int_to_ptr.vmem [resolvable:$true] %s362
          %365 = dma.hbm_to_vmem [thread:$0]  %s360, 128, %s363, %s352
        $region48: #{tpu_custom_call.1} parent=43 // pred_fallthru
          _
        // Predicated region
        $region49: #{tpu_custom_call.1} parent=43 // pred_check
          %p366 = pneg %p108
        $region50: #{tpu_custom_call.1} parent=43 // pred_check_branch
          %368 = sbr.rel (%p366) target = $region52
        $region51: #{tpu_custom_call.1} parent=43 // pred_region
          %s369 = sand.u32 %s24, 1
          %s370 = scalar_lea.sflag [#allocation6], %s369
          %s371 = sand.u32 %s98, 1
          %s372 = scalar_lea.vmem [#allocation7], %s371
          %s374 = ssub.s32 16, 16
          %375 = vsyncadd %s370, %s374
          %s376 = smul.addr %s32, 16
          %s377 = scalar_lea.hbm %s2, %s376
          %s379 = sshll.u32 %s372, 4
          %s380 = int_to_ptr.vmem [resolvable:$true] %s379
          %382 = dma.hbm_to_vmem [thread:$0]  %s377, 16, %s380, %s370
        $region52: #{tpu_custom_call.1} parent=43 // pred_fallthru
          _
      $region44: #{tpu_custom_call.1} parent=5 // pred_fallthru
        _
      %p383 = scmp.le.s32.totalorder 1, %s24
      %p384 = scmp.lt.s32.totalorder %s24, 10
      %p385 = pnand %p383, %p384
      %p386 = pneg %p385
      // Predicated region
      $region53: #{tpu_custom_call.1} parent=5 // pred_check
        _
      $region54: #{tpu_custom_call.1} parent=5 // pred_check_branch
        %388 = sbr.rel (%p385) target = $region56
      $region55: #{tpu_custom_call.1} parent=5 // pred_region
        %s389 = ssub.s32 %s24, 1
        // Predicated region
        $region57: #{tpu_custom_call.1} parent=55 // pred_check
          %p390 = pneg %p62
        $region58: #{tpu_custom_call.1} parent=55 // pred_check_branch
          %392 = sbr.rel (%p390) target = $region60
        $region59: #{tpu_custom_call.1} parent=55 // pred_region
          %393 = dma.done [#allocation3], 32
        $region60: #{tpu_custom_call.1} parent=55 // pred_fallthru
          _
        %s394 = sand.u32 %s29, 1
        %s395 = scalar_lea.sflag [#allocation6], %s394
        %s396 = sand.u32 %s75, 1
        %s397 = smul.addr %s396, 8
        %s398 = scalar_lea.vmem [#allocation5], %s397
        // Predicated region
        $region61: #{tpu_custom_call.1} parent=55 // pred_check
          %p399 = pneg %p88
        $region62: #{tpu_custom_call.1} parent=55 // pred_check_branch
          %401 = sbr.rel (%p399) target = $region64
        $region63: #{tpu_custom_call.1} parent=55 // pred_region
          %402 = dma.done %s395, 128
        $region64: #{tpu_custom_call.1} parent=55 // pred_fallthru
          _
        %s403 = sand.u32 %s29, 1
        %s404 = scalar_lea.sflag [#allocation6], %s403
        %s405 = sand.u32 %s101, 1
        %s406 = scalar_lea.vmem [#allocation7], %s405
        // Predicated region
        $region65: #{tpu_custom_call.1} parent=55 // pred_check
          %p407 = pneg %p114
        $region66: #{tpu_custom_call.1} parent=55 // pred_check_branch
          %409 = sbr.rel (%p407) target = $region68
        $region67: #{tpu_custom_call.1} parent=55 // pred_region
          %410 = dma.done %s404, 16
        $region68: #{tpu_custom_call.1} parent=55 // pred_fallthru
          _
        // Predicated region
        $region69: #{tpu_custom_call.1} parent=55 // pred_check
          %p411 = pneg %p135
        $region70: #{tpu_custom_call.1} parent=55 // pred_check_branch
          %413 = sbr.rel (%p411) target = $region72
        $region71: #{tpu_custom_call.1} parent=55 // pred_region
          %414 = dma.done [#allocation9], 256
        $region72: #{tpu_custom_call.1} parent=55 // pred_fallthru
          _
        // Predicated region
        $region73: #{tpu_custom_call.1} parent=55 // pred_check
          %p415 = pneg %p177
        $region74: #{tpu_custom_call.1} parent=55 // pred_check_branch
          %417 = sbr.rel (%p415) target = $region76
        $region75: #{tpu_custom_call.1} parent=55 // pred_region
          %418 = dma.done [#allocation9], 512
        $region76: #{tpu_custom_call.1} parent=55 // pred_fallthru
          _
        // Predicated region
        $region77: #{tpu_custom_call.1} parent=55 // pred_check
          %p419 = pneg %p219
        $region78: #{tpu_custom_call.1} parent=55 // pred_check_branch
          %421 = sbr.rel (%p419) target = $region80
        $region79: #{tpu_custom_call.1} parent=55 // pred_region
          %422 = dma.done [#allocation12], 512
        $region80: #{tpu_custom_call.1} parent=55 // pred_fallthru
          _
        %p423 = pneg %p62
        %p424 = pneg %p59
        %s425 = sand.u32 %s29, 1
        %s426 = scalar_lea.sflag [#allocation6], %s425
        %s427 = sand.u32 %s75, 1
        %s428 = smul.addr %s427, 8
        %s429 = scalar_lea.vmem [#allocation5], %s428
        %p430 = pneg %p88
        %p431 = pneg %p85
        %s432 = sand.u32 %s29, 1
        %s433 = scalar_lea.sflag [#allocation6], %s432
        %s434 = sand.u32 %s101, 1
        %s435 = scalar_lea.vmem [#allocation7], %s434
        %p436 = pneg %p114
        %p437 = pneg %p111
        %p438 = pneg %p135
        %p439 = pneg %p132
        %p440 = pneg %p156
        %p441 = pneg %p153
        %p442 = pneg %p177
        %p443 = pneg %p174
        %p444 = pneg %p198
        %p445 = pneg %p195
        %p446 = pneg %p219
        %p447 = pneg %p216
        %p448 = pneg %p240
        %p449 = pneg %p237
        %p450 = pneg %p268
        %p451 = pneg %p265
        %s452 = sand.u32 %s255, 1
        %s453 = scalar_lea.sflag [#allocation4], %s452
        %s454 = sand.u32 %s255, 1
        %s455 = smul.addr %s454, 2
        %s456 = scalar_lea.vmem [#allocation13], %s455
        %v457 = vld [vmem:[#allocation2] sm:$0x3]
        %v458 = vld [vmem:[%s398] sm:$0x3f]
        %v459 = vld [vmem:[%s406] sm:$0x1]
        %v461 = vlaneseq
        %v462 = vshrl.u32 %v461, 7
        %v463 = vsub.s32 0, %v462
        %v464 = vrot.slane %v459, %v463
        %vm466 = vcmask 48128
        %v468 = vsel %vm466, %v457, 0
        %vm470 = vcmask 1045504
        %v472 = vsel %vm470, %v458, 0
        %474 = vmatprep.subr.mxu0 0.0
        %475 = vmatpush1.msra.mxu0 %v472
        %476 = vmatprep.subr.mxu0 0.0
        %477 = vmatpush1.msra.mxu0 0.0
        %478 = vmatprep.subr.mxu0 0.0
        %479 = vmatpush1.msra.mxu0 0.0
        %480 = vmatprep.subr.mxu0 0.0
        %481 = vmatpush1.msra.mxu0 0.0
        %482 = vmatprep.subr.mxu0 0.0
        %483 = vmatpush1.msra.mxu0 0.0
        %484 = vmatprep.subr.mxu0 0.0
        %485 = vmatpush1.msra.mxu0 0.0
        %486 = vmatprep.subr.mxu0 0.0
        %487 = vmatpush1.msra.mxu0 0.0
        %488 = vmatprep.subr.mxu0 0.0
        %489 = vmatpush1.msra.mxu0 0.0
        %490 = vmatprep.subr.mxu0 0.0
        %491 = vmatpush1.msra.mxu0 0.0
        %492 = vmatprep.subr.mxu0 0.0
        %493 = vmatpush1.msra.mxu0 0.0
        %494 = vmatprep.subr.mxu0 0.0
        %495 = vmatpush1.msra.mxu0 0.0
        %496 = vmatprep.subr.mxu0 0.0
        %497 = vmatpush1.msra.mxu0 0.0
        %498 = vmatprep.subr.mxu0 0.0
        %499 = vmatpush1.msra.mxu0 0.0
        %500 = vmatprep.subr.mxu0 0.0
        %501 = vmatpush1.msra.mxu0 0.0
        %502 = vmatprep.subr.mxu0 0.0
        %503 = vmatpush1.msra.mxu0 0.0
        %504 = vmatprep.subr.mxu0 0.0
        %505 = vmatpush1.msra.mxu0 0.0
        %506 = vmatprep.subr.mxu0 0.0
        %507 = vmatpush1.msra.mxu0 0.0
        %508 = vmatprep.subr.mxu0 0.0
        %509 = vmatpush1.msra.mxu0 0.0
        %510 = vmatprep.subr.mxu0 0.0
        %511 = vmatpush1.msra.mxu0 0.0
        %512 = vmatprep.subr.mxu0 0.0
        %513 = vmatpush1.msra.mxu0 0.0
        %514 = vmatprep.subr.mxu0 0.0
        %515 = vmatpush1.msra.mxu0 0.0
        %516 = vmatprep.subr.mxu0 0.0
        %517 = vmatpush1.msra.mxu0 0.0
        %518 = vmatprep.subr.mxu0 0.0
        %519 = vmatpush1.msra.mxu0 0.0
        %520 = vmatprep.subr.mxu0 0.0
        %521 = vmatpush1.msra.mxu0 0.0
        %522 = vmatprep.subr.mxu0 0.0
        %523 = vmatpush1.msra.mxu0 0.0
        %524 = vmatprep.subr.mxu0 0.0
        %525 = vmatpush1.msra.mxu0 0.0
        %526 = vmatprep.subr.mxu0 0.0
        %527 = vmatpush1.msra.mxu0 0.0
        %528 = vmatprep.subr.mxu0 0.0
        %529 = vmatpush1.msra.mxu0 0.0
        %530 = vmatprep.subr.mxu0 0.0
        %531 = vmatpush1.msra.mxu0 0.0
        %532 = vmatprep.subr.mxu0 0.0
        %533 = vmatpush1.msra.mxu0 0.0
        %534 = vmatprep.subr.mxu0 0.0
        %535 = vmatpush1.msra.mxu0 0.0
        %536 = vmatprep.subr.mxu0 0.0
        %537 = vmatpush1.msra.mxu0 0.0
        %538 = vmatprep.mubr.f32.mxu0 0.0
        %539 = vmatmul.mubr.f32.gmra.mrb[0].mxu0 %v468
        %v540 = vpop.f32.mrb[0].mxu0
        %v541 = vadd.f32 %v464, %v540
        %v542 = vpop.f32.mrb[0].mxu0
        %543 = vdwg.mxu0
        %vm544 = vcmp.ge.f32.partialorder %v541, 0.0
        %v545 = vmul.f32 %v541, 0.01
        %v546 = vsel %vm544, %v541, %v545
        %v547 = vld [vmem:[#allocation8] sm:$0xff]
        %v548 = vld [vmem:[#allocation8 + $0x8] sm:$0xff]
        %v549 = vld [vmem:[%s4] sm:$0x1]
        %v551 = vlaneseq
        %v552 = vshrl.u32 %v551, 7
        %v553 = vsub.s32 0, %v552
        %v554 = vrot.slane %v549, %v553
        %vm556 = vcmask 130048
        %v558 = vsel %vm556, %v546, 0
        %560 = vmatprep.subr.mxu0 0.0
        %561 = vmatpush1.msra.mxu0 %v547
        %562 = vmatprep.subr.mxu0 0.0
        %563 = vmatpush1.msra.mxu0 %v548
        %564 = vmatprep.subr.mxu0 0.0
        %565 = vmatpush1.msra.mxu0 0.0
        %566 = vmatprep.subr.mxu0 0.0
        %567 = vmatpush1.msra.mxu0 0.0
        %568 = vmatprep.subr.mxu0 0.0
        %569 = vmatpush1.msra.mxu0 0.0
        %570 = vmatprep.subr.mxu0 0.0
        %571 = vmatpush1.msra.mxu0 0.0
        %572 = vmatprep.subr.mxu0 0.0
        %573 = vmatpush1.msra.mxu0 0.0
        %574 = vmatprep.subr.mxu0 0.0
        %575 = vmatpush1.msra.mxu0 0.0
        %576 = vmatprep.subr.mxu0 0.0
        %577 = vmatpush1.msra.mxu0 0.0
        %578 = vmatprep.subr.mxu0 0.0
        %579 = vmatpush1.msra.mxu0 0.0
        %580 = vmatprep.subr.mxu0 0.0
        %581 = vmatpush1.msra.mxu0 0.0
        %582 = vmatprep.subr.mxu0 0.0
        %583 = vmatpush1.msra.mxu0 0.0
        %584 = vmatprep.subr.mxu0 0.0
        %585 = vmatpush1.msra.mxu0 0.0
        %586 = vmatprep.subr.mxu0 0.0
        %587 = vmatpush1.msra.mxu0 0.0
        %588 = vmatprep.subr.mxu0 0.0
        %589 = vmatpush1.msra.mxu0 0.0
        %590 = vmatprep.subr.mxu0 0.0
        %591 = vmatpush1.msra.mxu0 0.0
        %592 = vmatprep.subr.mxu0 0.0
        %593 = vmatpush1.msra.mxu0 0.0
        %594 = vmatprep.subr.mxu0 0.0
        %595 = vmatpush1.msra.mxu0 0.0
        %596 = vmatprep.subr.mxu0 0.0
        %597 = vmatpush1.msra.mxu0 0.0
        %598 = vmatprep.subr.mxu0 0.0
        %599 = vmatpush1.msra.mxu0 0.0
        %600 = vmatprep.subr.mxu0 0.0
        %601 = vmatpush1.msra.mxu0 0.0
        %602 = vmatprep.subr.mxu0 0.0
        %603 = vmatpush1.msra.mxu0 0.0
        %604 = vmatprep.subr.mxu0 0.0
        %605 = vmatpush1.msra.mxu0 0.0
        %606 = vmatprep.subr.mxu0 0.0
        %607 = vmatpush1.msra.mxu0 0.0
        %608 = vmatprep.subr.mxu0 0.0
        %609 = vmatpush1.msra.mxu0 0.0
        %610 = vmatprep.subr.mxu0 0.0
        %611 = vmatpush1.msra.mxu0 0.0
        %612 = vmatprep.subr.mxu0 0.0
        %613 = vmatpush1.msra.mxu0 0.0
        %614 = vmatprep.subr.mxu0 0.0
        %615 = vmatpush1.msra.mxu0 0.0
        %616 = vmatprep.subr.mxu0 0.0
        %617 = vmatpush1.msra.mxu0 0.0
        %618 = vmatprep.subr.mxu0 0.0
        %619 = vmatpush1.msra.mxu0 0.0
        %620 = vmatprep.subr.mxu0 0.0
        %621 = vmatpush1.msra.mxu0 0.0
        %622 = vmatprep.subr.mxu0 0.0
        %623 = vmatpush1.msra.mxu0 0.0
        %624 = vmatprep.mubr.f32.mxu0 0.0
        %625 = vmatmul.mubr.f32.gmra.mrb[0].mxu0 %v558
        %v626 = vpop.f32.mrb[0].mxu0
        %v627 = vadd.f32 %v554, %v626
        %v628 = vpop.f32.mrb[0].mxu0
        %629 = vdwg.mxu0
        %vm630 = vcmp.ge.f32.partialorder %v627, 0.0
        %v631 = vmul.f32 %v627, 0.01
        %v632 = vsel %vm630, %v627, %v631
        %v633 = vld [vmem:[#allocation10] sm:$0xff]
        %v634 = vld [vmem:[#allocation10 + $0x8] sm:$0xff]
        %v635 = vld [vmem:[#allocation10 + $0x10] sm:$0xff]
        %v636 = vld [vmem:[#allocation10 + $0x18] sm:$0xff]
        %v637 = vld [vmem:[%s6] sm:$0x1]
        %v639 = vlaneseq
        %v640 = vshrl.u32 %v639, 7
        %v641 = vsub.s32 0, %v640
        %v642 = vrot.slane %v637, %v641
        %vm644 = vcmask 261120
        %v646 = vsel %vm644, %v632, 0
        %648 = vmatprep.subr.mxu0 0.0
        %649 = vmatpush1.msra.mxu0 %v633
        %650 = vmatprep.subr.mxu0 0.0
        %651 = vmatpush1.msra.mxu0 %v634
        %652 = vmatprep.subr.mxu0 0.0
        %653 = vmatpush1.msra.mxu0 %v635
        %654 = vmatprep.subr.mxu0 0.0
        %655 = vmatpush1.msra.mxu0 %v636
        %656 = vmatprep.subr.mxu0 0.0
        %657 = vmatpush1.msra.mxu0 0.0
        %658 = vmatprep.subr.mxu0 0.0
        %659 = vmatpush1.msra.mxu0 0.0
        %660 = vmatprep.subr.mxu0 0.0
        %661 = vmatpush1.msra.mxu0 0.0
        %662 = vmatprep.subr.mxu0 0.0
        %663 = vmatpush1.msra.mxu0 0.0
        %664 = vmatprep.subr.mxu0 0.0
        %665 = vmatpush1.msra.mxu0 0.0
        %666 = vmatprep.subr.mxu0 0.0
        %667 = vmatpush1.msra.mxu0 0.0
        %668 = vmatprep.subr.mxu0 0.0
        %669 = vmatpush1.msra.mxu0 0.0
        %670 = vmatprep.subr.mxu0 0.0
        %671 = vmatpush1.msra.mxu0 0.0
        %672 = vmatprep.subr.mxu0 0.0
        %673 = vmatpush1.msra.mxu0 0.0
        %674 = vmatprep.subr.mxu0 0.0
        %675 = vmatpush1.msra.mxu0 0.0
        %676 = vmatprep.subr.mxu0 0.0
        %677 = vmatpush1.msra.mxu0 0.0
        %678 = vmatprep.subr.mxu0 0.0
        %679 = vmatpush1.msra.mxu0 0.0
        %680 = vmatprep.subr.mxu0 0.0
        %681 = vmatpush1.msra.mxu0 0.0
        %682 = vmatprep.subr.mxu0 0.0
        %683 = vmatpush1.msra.mxu0 0.0
        %684 = vmatprep.subr.mxu0 0.0
        %685 = vmatpush1.msra.mxu0 0.0
        %686 = vmatprep.subr.mxu0 0.0
        %687 = vmatpush1.msra.mxu0 0.0
        %688 = vmatprep.subr.mxu0 0.0
        %689 = vmatpush1.msra.mxu0 0.0
        %690 = vmatprep.subr.mxu0 0.0
        %691 = vmatpush1.msra.mxu0 0.0
        %692 = vmatprep.subr.mxu0 0.0
        %693 = vmatpush1.msra.mxu0 0.0
        %694 = vmatprep.subr.mxu0 0.0
        %695 = vmatpush1.msra.mxu0 0.0
        %696 = vmatprep.subr.mxu0 0.0
        %697 = vmatpush1.msra.mxu0 0.0
        %698 = vmatprep.subr.mxu0 0.0
        %699 = vmatpush1.msra.mxu0 0.0
        %700 = vmatprep.subr.mxu0 0.0
        %701 = vmatpush1.msra.mxu0 0.0
        %702 = vmatprep.subr.mxu0 0.0
        %703 = vmatpush1.msra.mxu0 0.0
        %704 = vmatprep.subr.mxu0 0.0
        %705 = vmatpush1.msra.mxu0 0.0
        %706 = vmatprep.subr.mxu0 0.0
        %707 = vmatpush1.msra.mxu0 0.0
        %708 = vmatprep.subr.mxu0 0.0
        %709 = vmatpush1.msra.mxu0 0.0
        %710 = vmatprep.subr.mxu0 0.0
        %711 = vmatpush1.msra.mxu0 0.0
        %712 = vmatprep.mubr.f32.mxu0 0.0
        %713 = vmatmul.mubr.f32.gmra.mrb[0].mxu0 %v646
        %v714 = vpop.f32.mrb[0].mxu0
        %v715 = vadd.f32 %v642, %v714
        %v716 = vpop.f32.mrb[0].mxu0
        %717 = vdwg.mxu0
        %vm718 = vcmp.ge.f32.partialorder %v715, 0.0
        %v719 = vmul.f32 %v715, 0.01
        %v720 = vsel %vm718, %v715, %v719
        %v721 = vld [vmem:[#allocation11] sm:$0xff]
        %v722 = vld [vmem:[#allocation11 + $0x8] sm:$0xff]
        %v723 = vld [vmem:[#allocation11 + $0x10] sm:$0xff]
        %v724 = vld [vmem:[#allocation11 + $0x18] sm:$0xff]
        %v725 = vld [vmem:[%s8] sm:$0x1]
        %v727 = vlaneseq
        %v728 = vshrl.u32 %v727, 7
        %v729 = vsub.s32 0, %v728
        %v730 = vrot.slane %v725, %v729
        %v733 = vsel %vm644, %v720, 0
        %735 = vmatprep.subr.mxu0 0.0
        %736 = vmatpush1.msra.mxu0 %v721
        %737 = vmatprep.subr.mxu0 0.0
        %738 = vmatpush1.msra.mxu0 %v722
        %739 = vmatprep.subr.mxu0 0.0
        %740 = vmatpush1.msra.mxu0 %v723
        %741 = vmatprep.subr.mxu0 0.0
        %742 = vmatpush1.msra.mxu0 %v724
        %743 = vmatprep.subr.mxu0 0.0
        %744 = vmatpush1.msra.mxu0 0.0
        %745 = vmatprep.subr.mxu0 0.0
        %746 = vmatpush1.msra.mxu0 0.0
        %747 = vmatprep.subr.mxu0 0.0
        %748 = vmatpush1.msra.mxu0 0.0
        %749 = vmatprep.subr.mxu0 0.0
        %750 = vmatpush1.msra.mxu0 0.0
        %751 = vmatprep.subr.mxu0 0.0
        %752 = vmatpush1.msra.mxu0 0.0
        %753 = vmatprep.subr.mxu0 0.0
        %754 = vmatpush1.msra.mxu0 0.0
        %755 = vmatprep.subr.mxu0 0.0
        %756 = vmatpush1.msra.mxu0 0.0
        %757 = vmatprep.subr.mxu0 0.0
        %758 = vmatpush1.msra.mxu0 0.0
        %759 = vmatprep.subr.mxu0 0.0
        %760 = vmatpush1.msra.mxu0 0.0
        %761 = vmatprep.subr.mxu0 0.0
        %762 = vmatpush1.msra.mxu0 0.0
        %763 = vmatprep.subr.mxu0 0.0
        %764 = vmatpush1.msra.mxu0 0.0
        %765 = vmatprep.subr.mxu0 0.0
        %766 = vmatpush1.msra.mxu0 0.0
        %767 = vmatprep.subr.mxu0 0.0
        %768 = vmatpush1.msra.mxu0 0.0
        %769 = vmatprep.subr.mxu0 0.0
        %770 = vmatpush1.msra.mxu0 0.0
        %771 = vmatprep.subr.mxu0 0.0
        %772 = vmatpush1.msra.mxu0 0.0
        %773 = vmatprep.subr.mxu0 0.0
        %774 = vmatpush1.msra.mxu0 0.0
        %775 = vmatprep.subr.mxu0 0.0
        %776 = vmatpush1.msra.mxu0 0.0
        %777 = vmatprep.subr.mxu0 0.0
        %778 = vmatpush1.msra.mxu0 0.0
        %779 = vmatprep.subr.mxu0 0.0
        %780 = vmatpush1.msra.mxu0 0.0
        %781 = vmatprep.subr.mxu0 0.0
        %782 = vmatpush1.msra.mxu0 0.0
        %783 = vmatprep.subr.mxu0 0.0
        %784 = vmatpush1.msra.mxu0 0.0
        %785 = vmatprep.subr.mxu0 0.0
        %786 = vmatpush1.msra.mxu0 0.0
        %787 = vmatprep.subr.mxu0 0.0
        %788 = vmatpush1.msra.mxu0 0.0
        %789 = vmatprep.subr.mxu0 0.0
        %790 = vmatpush1.msra.mxu0 0.0
        %791 = vmatprep.subr.mxu0 0.0
        %792 = vmatpush1.msra.mxu0 0.0
        %793 = vmatprep.subr.mxu0 0.0
        %794 = vmatpush1.msra.mxu0 0.0
        %795 = vmatprep.subr.mxu0 0.0
        %796 = vmatpush1.msra.mxu0 0.0
        %797 = vmatprep.subr.mxu0 0.0
        %798 = vmatpush1.msra.mxu0 0.0
        %799 = vmatprep.mubr.f32.mxu0 0.0
        %800 = vmatmul.mubr.f32.gmra.mrb[0].mxu0 %v733
        %v801 = vpop.f32.mrb[0].mxu0
        %v802 = vadd.f32 %v730, %v801
        %v803 = vpop.f32.mrb[0].mxu0
        %804 = vdwg.mxu0
        %vm805 = vcmask 254976
        %806 = vst.msk [vmem:[%s456] sm:$0x3] %vm805, %v802
        %s807 = sand.u32 %s255, 1
        %s808 = scalar_lea.sflag [#allocation4], %s807
        %s809 = sand.u32 %s255, 1
        %s810 = smul.addr %s809, 2
        %s811 = scalar_lea.vmem [#allocation13], %s810
        // Predicated region
        $region81: #{tpu_custom_call.1} parent=55 // pred_check
          %p812 = pneg %p265
        $region82: #{tpu_custom_call.1} parent=55 // pred_check_branch
          %814 = sbr.rel (%p812) target = $region84
        $region83: #{tpu_custom_call.1} parent=55 // pred_region
          %s816 = ssub.s32 32, 32
          %817 = vsyncadd %s808, %s816
          %s818 = sadd.s32 %s33, %s34
          %s819 = smul.addr %s818, 32
          %s820 = scalar_lea.hbm %s9, %s819
          %s822 = sshll.u32 %s811, 4
          %s823 = int_to_ptr.vmem [resolvable:$true] %s822
          %825 = dma.vmem_to_hbm [thread:$0]  %s823, 32, %s820, %s808
        $region84: #{tpu_custom_call.1} parent=55 // pred_fallthru
          _
      $region56: #{tpu_custom_call.1} parent=5 // pred_fallthru
        _
      %p826 = scmp.le.s32.totalorder 2, %s24
      // Predicated region
      $region85: #{tpu_custom_call.1} parent=5 // pred_check
        %p827 = pneg %p826
      $region86: #{tpu_custom_call.1} parent=5 // pred_check_branch
        %829 = sbr.rel (%p827) target = $region88
      $region87: #{tpu_custom_call.1} parent=5 // pred_region
        %s830 = ssub.s32 %s24, 2
        // Predicated region
        $region89: #{tpu_custom_call.1} parent=87 // pred_check
          %p831 = pneg %p271
        $region90: #{tpu_custom_call.1} parent=87 // pred_check_branch
          %833 = sbr.rel (%p831) target = $region92
        $region91: #{tpu_custom_call.1} parent=87 // pred_region
          %s834 = sand.u32 %s256, 1
          %s835 = scalar_lea.sflag [#allocation4], %s834
          %s836 = sand.u32 %s256, 1
          %s837 = smul.addr %s836, 2
          %s838 = scalar_lea.vmem [#allocation13], %s837
          %839 = dma.done %s835, 32
        $region92: #{tpu_custom_call.1} parent=87 // pred_fallthru
          _
      $region88: #{tpu_custom_call.1} parent=5 // pred_fallthru
        _
    $region6: #{tpu_custom_call.1} parent=1 // loop_footer
      %s28 = sadd.s32 1, %s24
    $region7: #{tpu_custom_call.1} parent=1 // loop_footer_branch
      %23 = sbr.rel target = $region3
    $region8: #{tpu_custom_call.1} parent=1 // loop_exit
      _
    %840 = vsyncpa [#allocation3], 1
    %s841 = scalar_lea.sflag [#allocation3], 1
    %842 = vsyncpa %s841, 1
    %843 = vsyncpa [#allocation6], 1
    %s844 = scalar_lea.sflag [#allocation6], 1
    %845 = vsyncpa %s844, 1
    %846 = vsyncpa [#allocation9], 1
    %847 = vsyncpa [#allocation12], 1
    %848 = vsyncpa [#allocation4], 1
    %s849 = scalar_lea.sflag [#allocation4], 1
    %850 = vsyncpa %s849, 1

</llo_original>
